<compile_context>
chip_gen: v6e
topology: v6e:2x2x1
jax: 0.10.0
libtpu: 0.0.40
codegen_flags: <defaults>
</compile_context>

<pallas_src>
import math

import jax
import jax.numpy as jnp
from jax.experimental import pallas as pl
from jax.experimental.pallas import tpu as pltpu

HIDDEN = 20
NUM_LAYERS = 4                  # 1 input layer + (num_layers - 1) hidden layers, then output
NUM_HIDDEN = NUM_LAYERS - 1     # 3 hidden 20->20 layers
OUT_DIM = 5
HPAD = 24                       # hidden width padded to a sublane multiple (>= HIDDEN)
OUT_PAD = 8                     # output rows padded to one full sublane group


def seird_kernel(t_ref, w0_ref, w_ref, b_ref, o_ref):
    """One batch tile.

    t_ref:  [1, TB]            time input, batch on the lane axis
    w0_ref: [HPAD, 1]          Linear(1,20) weight column (zero-padded rows >= HIDDEN)
    w_ref:  [NUM_HIDDEN+1, HPAD, HPAD]  layers 1..3 hidden + layer 4 output (zero-padded)
    b_ref:  [NUM_LAYERS+1, HPAD, 1]     biases for layers 0..4 (zero-padded)
    o_ref:  [OUT_PAD, TB]
    """
    t = t_ref[...]                                                # [1, TB]

    # Layer 0 (in_features == 1): sublane-broadcast FMA on the VPU, no MXU.
    h = jnp.tanh(w0_ref[...] * t + b_ref[0])                      # [HPAD, TB]

    # Hidden layers 1..3: W[HPAD,HPAD] @ h[HPAD,TB] -> lane-dense N on the MXU.
    for l in range(NUM_HIDDEN):
        h = jnp.tanh(jnp.dot(w_ref[l], h,
                             preferred_element_type=jnp.float32) + b_ref[l + 1])

    # Output layer: slice operands to OUT_PAD rows BEFORE the matmul (4x less work,
    # no throwaway [HPAD, TB] value).  Rows OUT_DIM..OUT_PAD-1 stay zero by packing.
    w_out = w_ref[NUM_HIDDEN][:OUT_PAD, :]                        # [OUT_PAD, HPAD]
    b_out = b_ref[NUM_HIDDEN + 1][:OUT_PAD]                       # [OUT_PAD, 1]
    o = jnp.dot(w_out, h, preferred_element_type=jnp.float32) + b_out
    o_ref[...] = o.astype(o_ref.dtype)


def _choose_tile(n, tile_batch):
    """Lane tile (multiple of 128).  Grows with N up to tile_batch; capped so the
    grid has >= 2 steps whenever >= 2 lane chunks exist (v7x megacore sharding)."""
    chunks = pl.cdiv(n, 128)
    tile_chunks = max(1, min(max(tile_batch, 128) // 128, chunks))
    if chunks >= 2:
        tile_chunks = min(tile_chunks, pl.cdiv(chunks, 2))
    tile = 128 * tile_chunks
    n_pad = tile * pl.cdiv(n, tile)
    return tile, n_pad


def _xla_forward(t, w0_col, w_slab, b_slab):
    """Small-N fast path: plain jnp on the packed slabs (padding keeps rows exact)."""
    h = jnp.tanh(t.astype(jnp.float32) @ w0_col.T + b_slab[0, :, 0])       # [N, HPAD]
    for l in range(NUM_HIDDEN):
        h = jnp.tanh(h @ w_slab[l].T + b_slab[l + 1, :, 0])
    o = h @ w_slab[NUM_HIDDEN, :OUT_PAD].T + b_slab[NUM_HIDDEN + 1, :OUT_PAD, 0]
    return o[:, :OUT_DIM]


def seird_forward(t, w0_col, w_slab, b_slab, *, tile_batch=4096,
                  small_n_threshold=1024, force_pallas=False,
                  lane_major_output=False):
    """t: [N, 1].  Returns [N, OUT_DIM] (PyTorch layout) or, if lane_major_output,
    [OUT_DIM, N] to avoid the wrapper-side transpose for lane-major consumers."""
    N = t.shape[0]
    assert w0_col.shape == (HPAD, 1)
    assert w_slab.shape == (NUM_HIDDEN + 1, HPAD, HPAD)
    assert b_slab.shape == (NUM_LAYERS + 1, HPAD, 1)

    # Tiny batches: pallas_call dispatch + pad/transpose dominates -> plain XLA.
    if N <= small_n_threshold and not force_pallas:
        o = _xla_forward(t, w0_col, w_slab, b_slab)
        return o.T if lane_major_output else o

    tile, n_pad = _choose_tile(N, tile_batch)

    # Transposed, zero-padded input: batch on the lane axis.
    t_lane = jnp.zeros((1, n_pad), jnp.float32).at[0, :N].set(
        t.reshape(N).astype(jnp.float32))

    # Explicit VMEM budget (matters on v7x: 64 MiB physical, 32 MiB default scoped).
    elem = 4
    io_bytes = 2 * tile * elem * (1 + OUT_PAD)                        # dbl-buffered in/out
    wb_bytes = 2 * elem * (w0_col.size + w_slab.size + b_slab.size)   # dbl-buffered weights
    act_bytes = 8 * tile * elem * HPAD                                # h + matmul temporaries
    vmem_limit = int(min(max(io_bytes + wb_bytes + act_bytes, 16 << 20), 48 << 20))

    out = pl.pallas_call(
        seird_kernel,
        out_shape=jax.ShapeDtypeStruct((OUT_PAD, n_pad), jnp.float32),
        grid_spec=pltpu.PrefetchScalarGridSpec(
            num_scalar_prefetch=0,
            grid=(n_pad // tile,),
            in_specs=[
                pl.BlockSpec((1, tile), lambda i: (0, i)),              # t (lane-tiled)
                pl.BlockSpec(w0_col.shape, lambda i: (0, 0)),           # layer-0 weight col
                pl.BlockSpec(w_slab.shape, lambda i: (0, 0, 0)),        # packed weights
                pl.BlockSpec(b_slab.shape, lambda i: (0, 0, 0)),        # packed biases
            ],
            out_specs=pl.BlockSpec((OUT_PAD, tile), lambda i: (0, i)),
        ),
        compiler_params=pltpu.CompilerParams(
            dimension_semantics=("parallel",),
            vmem_limit_bytes=vmem_limit),
    )(t_lane, w0_col, w_slab, b_slab)

    if lane_major_output:
        return out[:OUT_DIM, :N]
    return out[:OUT_DIM, :N].T


def init_params(key):
    """xavier_uniform(gain=tanh) weights in PyTorch [out, in] convention, bias=0.001."""
    gain = 5.0 / 3.0  # nn.init.calculate_gain('tanh')
    dims = [1] + [HIDDEN] * NUM_LAYERS + [OUT_DIM]
    params = []
    for i in range(len(dims) - 1):
        fan_in, fan_out = dims[i], dims[i + 1]
        bound = gain * math.sqrt(6.0 / (fan_in + fan_out))
        key, sub = jax.random.split(key)
        w = jax.random.uniform(sub, (fan_out, fan_in),
                               minval=-bound, maxval=bound, dtype=jnp.float32)
        b = jnp.full((fan_out,), 0.001, dtype=jnp.float32)
        params.append((w, b))
    return params


def pack_params(params):
    """Pack the 5 layers into zero-padded slabs:
       w0_col [HPAD, 1]            : layer 0 (Linear(1,20)) weight column
       w_slab [4, HPAD, HPAD]      : layers 1..3 (hidden) and layer 4 (output)
       b_slab [5, HPAD, 1]         : biases for layers 0..4
    Zero padding of rows/cols >= HIDDEN (and output rows >= OUT_DIM) plus tanh(0)=0
    is REQUIRED for correctness of the padded activation rows."""
    assert len(params) == NUM_LAYERS + 1
    w0, b0 = params[0]
    w0_col = jnp.zeros((HPAD, 1), jnp.float32).at[:w0.shape[0], :].set(w0)

    w_slab = jnp.zeros((NUM_HIDDEN + 1, HPAD, HPAD), jnp.float32)
    b_slab = jnp.zeros((NUM_LAYERS + 1, HPAD, 1), jnp.float32)
    b_slab = b_slab.at[0, :b0.shape[0], 0].set(b0)
    for l, (w, b) in enumerate(params[1:]):
        o, i = w.shape
        w_slab = w_slab.at[l, :o, :i].set(w)
        b_slab = b_slab.at[l + 1, :o, 0].set(b)
    return w0_col, w_slab, b_slab


def seird_ref(t, params):
    """Pure-JAX reference (PyTorch convention: x @ W.T + b)."""
    h = t.astype(jnp.float32)
    for (w, b) in params[:-1]:
        h = jnp.tanh(h @ w.T + b)
    w, b = params[-1]
    return h @ w.T + b


if __name__ == "__main__":
    key = jax.random.PRNGKey(0)
    pkey, tkey, tkey2 = jax.random.split(key, 3)
    params = init_params(pkey)
    w0_col, w_slab, b_slab = pack_params(params)

    # Small demo batch, forced through the Pallas path so the kernel itself runs.
    N_small = 8
    t_small = jax.random.uniform(tkey, (N_small, 1), dtype=jnp.float32)
    out_small = jax.block_until_ready(
        seird_forward(t_small, w0_col, w_slab, b_slab, force_pallas=True))
    ref_small = seird_ref(t_small, params)
    assert out_small.shape == (N_small, OUT_DIM)
    assert jnp.allclose(out_small, ref_small, atol=1e-5, rtol=1e-5), "small-batch mismatch"

    # Moderate batch: exercises the >=2-step "parallel" grid (megacore on v7x).
    N_big = 1536
    t_big = jax.random.uniform(tkey2, (N_big, 1), dtype=jnp.float32)
    out_big = jax.block_until_ready(
        seird_forward(t_big, w0_col, w_slab, b_slab))
    ref_big = seird_ref(t_big, params)
    assert out_big.shape == (N_big, OUT_DIM)
    assert jnp.allclose(out_big, ref_big, atol=1e-5, rtol=1e-5), "multi-tile mismatch"

    print("KERNEL_OK")
</pallas_src>

<mosaic_0001>
module attributes {stable_mosaic.version = 11 : i64} {
  func.func @seird_kernel(%arg0: i32, %arg1: memref<1x128xf32, #tpu.memory_space<vmem>>, %arg2: memref<24x1xf32, #tpu.memory_space<vmem>>, %arg3: memref<4x24x24xf32, #tpu.memory_space<vmem>>, %arg4: memref<5x24x1xf32, #tpu.memory_space<vmem>>, %arg5: memref<8x128xf32, #tpu.memory_space<vmem>>) attributes {dimension_semantics = [#tpu.dimension_semantics<parallel>], iteration_bounds = array<i64: 1>, scalar_prefetch = 0 : i64, scratch_operands = 0 : i64, tpu.core_type = #tpu.core_type<tc>, window_params = [{transform_indices = @transform_0, window_bounds = array<i64: 1, 128>}, {pipeline_mode = #tpu.pipeline_mode<synchronous>, transform_indices = @transform_1, window_bounds = array<i64: 24, 1>}, {pipeline_mode = #tpu.pipeline_mode<synchronous>, transform_indices = @transform_2, window_bounds = array<i64: 4, 24, 24>}, {pipeline_mode = #tpu.pipeline_mode<synchronous>, transform_indices = @transform_3, window_bounds = array<i64: 5, 24, 1>}, {transform_indices = @transform_4, window_bounds = array<i64: 8, 128>}]} {
    %c0 = arith.constant 0 : index
    %c0_0 = arith.constant 0 : index
    %0 = vector.load %arg1[%c0, %c0_0] : memref<1x128xf32, #tpu.memory_space<vmem>>, vector<1x128xf32>
    %c0_1 = arith.constant 0 : index
    %c0_2 = arith.constant 0 : index
    %1 = vector.load %arg2[%c0_1, %c0_2] : memref<24x1xf32, #tpu.memory_space<vmem>>, vector<24x1xf32>
    %2 = vector.broadcast %1 : vector<24x1xf32> to vector<24x128xf32>
    %3 = vector.broadcast %0 : vector<1x128xf32> to vector<24x128xf32>
    %4 = arith.mulf %2, %3 : vector<24x128xf32>
    %c0_3 = arith.constant 0 : index
    %c0_4 = arith.constant 0 : index
    %c0_5 = arith.constant 0 : index
    %5 = vector.load %arg4[%c0_3, %c0_4, %c0_5] : memref<5x24x1xf32, #tpu.memory_space<vmem>>, vector<1x24x1xf32>
    %6 = vector.shape_cast %5 : vector<1x24x1xf32> to vector<24x1xf32>
    %7 = vector.broadcast %6 : vector<24x1xf32> to vector<24x128xf32>
    %8 = arith.addf %4, %7 : vector<24x128xf32>
    %9 = math.tanh %8 : vector<24x128xf32>
    %c0_6 = arith.constant 0 : index
    %c0_7 = arith.constant 0 : index
    %c0_8 = arith.constant 0 : index
    %10 = vector.load %arg3[%c0_6, %c0_7, %c0_8] : memref<4x24x24xf32, #tpu.memory_space<vmem>>, vector<1x24x24xf32>
    %11 = vector.shape_cast %10 : vector<1x24x24xf32> to vector<24x24xf32>
    %cst = arith.constant dense<0.000000e+00> : vector<24x128xf32>
    %12 = tpu.matmul %11, %9, %cst {dimension_numbers = #tpu.dot_dimension_numbers<[1], [0], [0], [1], [0, 0, 1, 1], [], []>} : vector<24x24xf32>, vector<24x128xf32>, vector<24x128xf32> -> vector<24x128xf32>
    %c1 = arith.constant 1 : index
    %c0_9 = arith.constant 0 : index
    %c0_10 = arith.constant 0 : index
    %13 = vector.load %arg4[%c1, %c0_9, %c0_10] : memref<5x24x1xf32, #tpu.memory_space<vmem>>, vector<1x24x1xf32>
    %14 = vector.shape_cast %13 : vector<1x24x1xf32> to vector<24x1xf32>
    %15 = vector.broadcast %14 : vector<24x1xf32> to vector<24x128xf32>
    %16 = arith.addf %12, %15 : vector<24x128xf32>
    %17 = math.tanh %16 : vector<24x128xf32>
    %c1_11 = arith.constant 1 : index
    %c0_12 = arith.constant 0 : index
    %c0_13 = arith.constant 0 : index
    %18 = vector.load %arg3[%c1_11, %c0_12, %c0_13] : memref<4x24x24xf32, #tpu.memory_space<vmem>>, vector<1x24x24xf32>
    %19 = vector.shape_cast %18 : vector<1x24x24xf32> to vector<24x24xf32>
    %cst_14 = arith.constant dense<0.000000e+00> : vector<24x128xf32>
    %20 = tpu.matmul %19, %17, %cst_14 {dimension_numbers = #tpu.dot_dimension_numbers<[1], [0], [0], [1], [0, 0, 1, 1], [], []>} : vector<24x24xf32>, vector<24x128xf32>, vector<24x128xf32> -> vector<24x128xf32>
    %c2 = arith.constant 2 : index
    %c0_15 = arith.constant 0 : index
    %c0_16 = arith.constant 0 : index
    %21 = vector.load %arg4[%c2, %c0_15, %c0_16] : memref<5x24x1xf32, #tpu.memory_space<vmem>>, vector<1x24x1xf32>
    %22 = vector.shape_cast %21 : vector<1x24x1xf32> to vector<24x1xf32>
    %23 = vector.broadcast %22 : vector<24x1xf32> to vector<24x128xf32>
    %24 = arith.addf %20, %23 : vector<24x128xf32>
    %25 = math.tanh %24 : vector<24x128xf32>
    %c2_17 = arith.constant 2 : index
    %c0_18 = arith.constant 0 : index
    %c0_19 = arith.constant 0 : index
    %26 = vector.load %arg3[%c2_17, %c0_18, %c0_19] : memref<4x24x24xf32, #tpu.memory_space<vmem>>, vector<1x24x24xf32>
    %27 = vector.shape_cast %26 : vector<1x24x24xf32> to vector<24x24xf32>
    %cst_20 = arith.constant dense<0.000000e+00> : vector<24x128xf32>
    %28 = tpu.matmul %27, %25, %cst_20 {dimension_numbers = #tpu.dot_dimension_numbers<[1], [0], [0], [1], [0, 0, 1, 1], [], []>} : vector<24x24xf32>, vector<24x128xf32>, vector<24x128xf32> -> vector<24x128xf32>
    %c3 = arith.constant 3 : index
    %c0_21 = arith.constant 0 : index
    %c0_22 = arith.constant 0 : index
    %29 = vector.load %arg4[%c3, %c0_21, %c0_22] : memref<5x24x1xf32, #tpu.memory_space<vmem>>, vector<1x24x1xf32>
    %30 = vector.shape_cast %29 : vector<1x24x1xf32> to vector<24x1xf32>
    %31 = vector.broadcast %30 : vector<24x1xf32> to vector<24x128xf32>
    %32 = arith.addf %28, %31 : vector<24x128xf32>
    %33 = math.tanh %32 : vector<24x128xf32>
    %c3_23 = arith.constant 3 : index
    %c0_24 = arith.constant 0 : index
    %c0_25 = arith.constant 0 : index
    %34 = vector.load %arg3[%c3_23, %c0_24, %c0_25] : memref<4x24x24xf32, #tpu.memory_space<vmem>>, vector<1x24x24xf32>
    %35 = vector.shape_cast %34 : vector<1x24x24xf32> to vector<24x24xf32>
    %36 = vector.extract_strided_slice %35 {offsets = [0, 0], sizes = [8, 24], strides = [1, 1]} : vector<24x24xf32> to vector<8x24xf32>
    %c4 = arith.constant 4 : index
    %c0_26 = arith.constant 0 : index
    %c0_27 = arith.constant 0 : index
    %37 = vector.load %arg4[%c4, %c0_26, %c0_27] : memref<5x24x1xf32, #tpu.memory_space<vmem>>, vector<1x24x1xf32>
    %38 = vector.shape_cast %37 : vector<1x24x1xf32> to vector<24x1xf32>
    %39 = vector.extract_strided_slice %38 {offsets = [0, 0], sizes = [8, 1], strides = [1, 1]} : vector<24x1xf32> to vector<8x1xf32>
    %cst_28 = arith.constant dense<0.000000e+00> : vector<8x128xf32>
    %40 = tpu.matmul %36, %33, %cst_28 {dimension_numbers = #tpu.dot_dimension_numbers<[1], [0], [0], [1], [0, 0, 1, 1], [], []>} : vector<8x24xf32>, vector<24x128xf32>, vector<8x128xf32> -> vector<8x128xf32>
    %41 = vector.broadcast %39 : vector<8x1xf32> to vector<8x128xf32>
    %42 = arith.addf %40, %41 : vector<8x128xf32>
    %c0_29 = arith.constant 0 : index
    %c0_30 = arith.constant 0 : index
    %43 = vector.load %arg5[%c0_29, %c0_30] : memref<8x128xf32, #tpu.memory_space<vmem>>, vector<8x128xf32>
    tpu.vector_store %arg5[%c0_29, %c0_30], %42 {strides = array<i32>} : memref<8x128xf32, #tpu.memory_space<vmem>>, vector<8x128xf32>,
    return
  }
  func.func @transform_0(%arg0: i32) -> (i32, i32) {
    %c0_i32 = arith.constant 0 : i32
    %c0_i32_0 = arith.constant 0 : i32
    return %c0_i32, %arg0 : i32, i32
  }
  func.func @transform_1(%arg0: i32) -> (i32, i32) {
    %c0_i32 = arith.constant 0 : i32
    %c0_i32_0 = arith.constant 0 : i32
    %c0_i32_1 = arith.constant 0 : i32
    return %c0_i32, %c0_i32_0 : i32, i32
  }
  func.func @transform_2(%arg0: i32) -> (i32, i32, i32) {
    %c0_i32 = arith.constant 0 : i32
    %c0_i32_0 = arith.constant 0 : i32
    %c0_i32_1 = arith.constant 0 : i32
    %c0_i32_2 = arith.constant 0 : i32
    return %c0_i32, %c0_i32_0, %c0_i32_1 : i32, i32, i32
  }
  func.func @transform_3(%arg0: i32) -> (i32, i32, i32) {
    %c0_i32 = arith.constant 0 : i32
    %c0_i32_0 = arith.constant 0 : i32
    %c0_i32_1 = arith.constant 0 : i32
    %c0_i32_2 = arith.constant 0 : i32
    return %c0_i32, %c0_i32_0, %c0_i32_1 : i32, i32, i32
  }
  func.func @transform_4(%arg0: i32) -> (i32, i32) {
    %c0_i32 = arith.constant 0 : i32
    %c0_i32_0 = arith.constant 0 : i32
    return %c0_i32, %arg0 : i32, i32
  }
}

</mosaic_0001>

<llo_original>
// kernel: tpu_custom_call.1
$region0: #{tpu_custom_call.1}
  #allocation0 [shape = 'u32[]', space=smem, size = 0x4, offset = 0x4, fixed_abs, tag = 'smem constant byte address 0x4 - core index']
  #allocation1 [shape = 'u32[144,128]{1,0:T(1,128)}', space=vmem, size = 0x12000, scoped, tag = 'internal scratch']
  %s0 = inlined_call_operand.vmem [shape: f32[1,128], index: 0, kind: input, shape index: {}]
  %s1 = inlined_call_operand.vmem [shape: f32[24,1], index: 1, kind: input, shape index: {}]
  %s2 = inlined_call_operand.vmem [shape: f32[4,24,24], index: 2, kind: input, shape index: {}]
  %s3 = inlined_call_operand.vmem [shape: f32[5,24,1], index: 3, kind: input, shape index: {}]
  %s4 = inlined_call_operand.hbm [shape: f32[8,128], index: 4, kind: output, shape index: {}]
  %s5 = sld [smem:[#allocation0]]
  $region26: #{tpu_custom_call.1} parent=0
    _
  %s7 = ssub.s32 1, %s5
  %s8 = scalar_select 0, %s7, %s5
  $region1: #{tpu_custom_call.1} parent=0
    #allocation2 [shape = 'u8[4096]{0}', space=vmem, size = 0x1000, scoped, tag = 'output window, operand 0, single buffered']
    #allocation3 [shape = 's32[1]{0}', space=sflag, size = 0x4, scoped, tag = 'scoped memory for tpu_custom_call.1']
    %9 = vsyncpa [#allocation3], 0
    // Predicated region
    $region2: #{tpu_custom_call.1} parent=1 // pred_check
      _
    $region3: #{tpu_custom_call.1} parent=1 // pred_check_branch
      %11 = sbr.rel (0) target = $region5
    $region4: #{tpu_custom_call.1} parent=1 // pred_region
      _
    $region5: #{tpu_custom_call.1} parent=1 // pred_fallthru
      _
    // Predicated region
    $region6: #{tpu_custom_call.1} parent=1 // pred_check
      _
    $region7: #{tpu_custom_call.1} parent=1 // pred_check_branch
      %13 = sbr.rel (0) target = $region9
    $region8: #{tpu_custom_call.1} parent=1 // pred_region
      _
    $region9: #{tpu_custom_call.1} parent=1 // pred_fallthru
      _
    // Predicated region
    $region10: #{tpu_custom_call.1} parent=1 // pred_check
      _
    $region11: #{tpu_custom_call.1} parent=1 // pred_check_branch
      %15 = sbr.rel (0) target = $region13
    $region12: #{tpu_custom_call.1} parent=1 // pred_region
      _
    $region13: #{tpu_custom_call.1} parent=1 // pred_fallthru
      _
    // Predicated region
    $region14: #{tpu_custom_call.1} parent=1 // pred_check
      _
    $region15: #{tpu_custom_call.1} parent=1 // pred_check_branch
      %17 = sbr.rel (0) target = $region17
    $region16: #{tpu_custom_call.1} parent=1 // pred_region
      _
    $region17: #{tpu_custom_call.1} parent=1 // pred_fallthru
      _
    %v18 = vld [vmem:[%s0] sm:$0x1]
    %v19 = vld [vmem:[%s1] sm:$0xff]
    %v20 = vld [vmem:[%s1 + $0x8] sm:$0xff]
    %v21 = vld [vmem:[%s1 + $0x10] sm:$0xff]
    %23 = vset.pattern.permute.xlu0 0
    %24 = vperm.xlu0 %23, %v19
    %v25 = vpop.permute.xlu0 %24
    %28 = vset.pattern.permute.xlu0 0
    %29 = vperm.xlu0 %28, %v20
    %v30 = vpop.permute.xlu0 %29
    %33 = vset.pattern.permute.xlu0 0
    %34 = vperm.xlu0 %33, %v21
    %v35 = vpop.permute.xlu0 %34
    %v38 = vlaneseq
    %v39 = vshrl.u32 %v38, 7
    %v40 = vsub.s32 0, %v39
    %v41 = vrot.slane %v18, %v40
    %v43 = vmul.f32 %v25, %v41
    %v44 = vmul.f32 %v30, %v41
    %v45 = vmul.f32 %v35, %v41
    %v46 = vld [vmem:[%s3] sm:$0xff]
    %v47 = vld [vmem:[%s3 + $0x8] sm:$0xff]
    %v48 = vld [vmem:[%s3 + $0x10] sm:$0xff]
    %50 = vset.pattern.permute.xlu0 0
    %51 = vperm.xlu0 %50, %v46
    %v52 = vpop.permute.xlu0 %51
    %55 = vset.pattern.permute.xlu0 0
    %56 = vperm.xlu0 %55, %v47
    %v57 = vpop.permute.xlu0 %56
    %60 = vset.pattern.permute.xlu0 0
    %61 = vperm.xlu0 %60, %v48
    %v62 = vpop.permute.xlu0 %61
    %v64 = vadd.f32 %v43, %v52
    %v65 = vadd.f32 %v44, %v57
    %v66 = vadd.f32 %v45, %v62
    %v67 = vtanh.pop %v64
    %v68 = vtanh.pop %v65
    %v69 = vtanh.pop %v66
    %v70 = vld [vmem:[%s2] sm:$0xff]
    %v71 = vld [vmem:[%s2 + $0x8] sm:$0xff]
    %v72 = vld [vmem:[%s2 + $0x10] sm:$0xff]
    %s73 = scalar_lea.vmem %s3, 24
    %v74 = vld [vmem:[%s73] sm:$0xff]
    %v75 = vld [vmem:[%s73 + $0x8] sm:$0xff]
    %v76 = vld [vmem:[%s73 + $0x10] sm:$0xff]
    %78 = vset.pattern.permute.xlu0 0
    %79 = vperm.xlu0 %78, %v74
    %v80 = vpop.permute.xlu0 %79
    %83 = vset.pattern.permute.xlu0 0
    %84 = vperm.xlu0 %83, %v75
    %v85 = vpop.permute.xlu0 %84
    %88 = vset.pattern.permute.xlu0 0
    %89 = vperm.xlu0 %88, %v76
    %v90 = vpop.permute.xlu0 %89
    %vm92 = vcmask 195584
    %v94 = vsel %vm92, %v70, 0
    %v97 = vsel %vm92, %v71, 0
    %v100 = vsel %vm92, %v72, 0
    %102 = vmatprep.subr.mxu0 0.0
    %103 = vmatpush1.msra.mxu0 0.0
    %104 = vmatprep.subr.mxu0 0.0
    %105 = vmatpush1.msra.mxu0 0.0
    %106 = vmatprep.subr.mxu0 0.0
    %107 = vmatpush1.msra.mxu0 0.0
    %108 = vmatprep.subr.mxu0 0.0
    %109 = vmatpush1.msra.mxu0 0.0
    %110 = vmatprep.subr.mxu0 0.0
    %111 = vmatpush1.msra.mxu0 0.0
    %112 = vmatprep.subr.mxu0 0.0
    %113 = vmatpush1.msra.mxu0 0.0
    %114 = vmatprep.subr.mxu0 0.0
    %115 = vmatpush1.msra.mxu0 0.0
    %116 = vmatprep.subr.mxu0 0.0
    %117 = vmatpush1.msra.mxu0 0.0
    %118 = vmatprep.subr.mxu0 0.0
    %119 = vmatpush1.msra.mxu0 0.0
    %120 = vmatprep.subr.mxu0 0.0
    %121 = vmatpush1.msra.mxu0 0.0
    %122 = vmatprep.subr.mxu0 0.0
    %123 = vmatpush1.msra.mxu0 0.0
    %124 = vmatprep.subr.mxu0 0.0
    %125 = vmatpush1.msra.mxu0 0.0
    %126 = vmatprep.subr.mxu0 0.0
    %127 = vmatpush1.msra.mxu0 0.0
    %128 = vmatprep.subr.mxu0 0.0
    %129 = vmatpush1.msra.mxu0 %v69
    %130 = vmatprep.subr.mxu0 0.0
    %131 = vmatpush1.msra.mxu0 %v68
    %132 = vmatprep.subr.mxu0 0.0
    %133 = vmatpush1.msra.mxu0 %v67
    %134 = vmatprep.subr.mxu0 0.0
    %135 = vmatpush2.msra.mxu0 0.0
    %136 = vmatprep.subr.mxu0 0.0
    %137 = vmatpush2.msra.mxu0 0.0
    %138 = vmatprep.subr.mxu0 0.0
    %139 = vmatpush2.msra.mxu0 0.0
    %140 = vmatprep.subr.mxu0 0.0
    %141 = vmatpush2.msra.mxu0 0.0
    %142 = vmatprep.subr.mxu0 0.0
    %143 = vmatpush2.msra.mxu0 0.0
    %144 = vmatprep.subr.mxu0 0.0
    %145 = vmatpush2.msra.mxu0 0.0
    %146 = vmatprep.subr.mxu0 0.0
    %147 = vmatpush2.msra.mxu0 0.0
    %148 = vmatprep.subr.mxu0 0.0
    %149 = vmatpush2.msra.mxu0 0.0
    %150 = vmatprep.subr.mxu0 0.0
    %151 = vmatpush2.msra.mxu0 0.0
    %152 = vmatprep.subr.mxu0 0.0
    %153 = vmatpush2.msra.mxu0 0.0
    %154 = vmatprep.subr.mxu0 0.0
    %155 = vmatpush2.msra.mxu0 0.0
    %156 = vmatprep.subr.mxu0 0.0
    %157 = vmatpush2.msra.mxu0 0.0
    %158 = vmatprep.subr.mxu0 0.0
    %159 = vmatpush2.msra.mxu0 0.0
    %160 = vmatprep.subr.mxu0 0.0
    %161 = vmatpush2.msra.mxu0 0.0
    %162 = vmatprep.subr.mxu0 0.0
    %163 = vmatpush2.msra.mxu0 0.0
    %164 = vmatprep.subr.mxu0 0.0
    %165 = vmatpush2.msra.mxu0 0.0
    %166 = vmatprep.mubr.f32.mxu0 0.0
    %167 = vmatmul.mubr.f32.gmra.mxu0 %v94
    %v168 = vpop.f32.mrf.mxu0
    %v169 = vadd.f32 %v80, %v168
    %v170 = vpop.f32.mrf.mxu0
    %171 = vmatprep.mubr.f32.mxu0 0.0
    %172 = vmatmul.mubr.f32.gmra.mxu0 %v97
    %v173 = vpop.f32.mrf.mxu0
    %v174 = vadd.f32 %v85, %v173
    %v175 = vpop.f32.mrf.mxu0
    %176 = vmatprep.mubr.f32.mxu0 0.0
    %177 = vmatmul.mubr.f32.gmra.mxu0 %v100
    %v178 = vpop.f32.mrf.mxu0
    %v179 = vadd.f32 %v90, %v178
    %v180 = vpop.f32.mrf.mxu0
    %181 = vdwg.mxu0
    %v182 = vtanh.pop %v169
    %v183 = vtanh.pop %v174
    %v184 = vtanh.pop %v179
    %s185 = scalar_lea.vmem %s2, 24
    %v186 = vld [vmem:[%s185] sm:$0xff]
    %v187 = vld [vmem:[%s185 + $0x8] sm:$0xff]
    %v188 = vld [vmem:[%s185 + $0x10] sm:$0xff]
    %s189 = scalar_lea.vmem %s3, 48
    %v190 = vld [vmem:[%s189] sm:$0xff]
    %v191 = vld [vmem:[%s189 + $0x8] sm:$0xff]
    %v192 = vld [vmem:[%s189 + $0x10] sm:$0xff]
    %194 = vset.pattern.permute.xlu0 0
    %195 = vperm.xlu0 %194, %v190
    %v196 = vpop.permute.xlu0 %195
    %199 = vset.pattern.permute.xlu0 0
    %200 = vperm.xlu0 %199, %v191
    %v201 = vpop.permute.xlu0 %200
    %204 = vset.pattern.permute.xlu0 0
    %205 = vperm.xlu0 %204, %v192
    %v206 = vpop.permute.xlu0 %205
    %v209 = vsel %vm92, %v186, 0
    %v212 = vsel %vm92, %v187, 0
    %v215 = vsel %vm92, %v188, 0
    %217 = vmatprep.subr.mxu0 0.0
    %218 = vmatpush1.msra.mxu0 0.0
    %219 = vmatprep.subr.mxu0 0.0
    %220 = vmatpush1.msra.mxu0 0.0
    %221 = vmatprep.subr.mxu0 0.0
    %222 = vmatpush1.msra.mxu0 0.0
    %223 = vmatprep.subr.mxu0 0.0
    %224 = vmatpush1.msra.mxu0 0.0
    %225 = vmatprep.subr.mxu0 0.0
    %226 = vmatpush1.msra.mxu0 0.0
    %227 = vmatprep.subr.mxu0 0.0
    %228 = vmatpush1.msra.mxu0 0.0
    %229 = vmatprep.subr.mxu0 0.0
    %230 = vmatpush1.msra.mxu0 0.0
    %231 = vmatprep.subr.mxu0 0.0
    %232 = vmatpush1.msra.mxu0 0.0
    %233 = vmatprep.subr.mxu0 0.0
    %234 = vmatpush1.msra.mxu0 0.0
    %235 = vmatprep.subr.mxu0 0.0
    %236 = vmatpush1.msra.mxu0 0.0
    %237 = vmatprep.subr.mxu0 0.0
    %238 = vmatpush1.msra.mxu0 0.0
    %239 = vmatprep.subr.mxu0 0.0
    %240 = vmatpush1.msra.mxu0 0.0
    %241 = vmatprep.subr.mxu0 0.0
    %242 = vmatpush1.msra.mxu0 0.0
    %243 = vmatprep.subr.mxu0 0.0
    %244 = vmatpush1.msra.mxu0 %v184
    %245 = vmatprep.subr.mxu0 0.0
    %246 = vmatpush1.msra.mxu0 %v183
    %247 = vmatprep.subr.mxu0 0.0
    %248 = vmatpush1.msra.mxu0 %v182
    %249 = vmatprep.subr.mxu0 0.0
    %250 = vmatpush2.msra.mxu0 0.0
    %251 = vmatprep.subr.mxu0 0.0
    %252 = vmatpush2.msra.mxu0 0.0
    %253 = vmatprep.subr.mxu0 0.0
    %254 = vmatpush2.msra.mxu0 0.0
    %255 = vmatprep.subr.mxu0 0.0
    %256 = vmatpush2.msra.mxu0 0.0
    %257 = vmatprep.subr.mxu0 0.0
    %258 = vmatpush2.msra.mxu0 0.0
    %259 = vmatprep.subr.mxu0 0.0
    %260 = vmatpush2.msra.mxu0 0.0
    %261 = vmatprep.subr.mxu0 0.0
    %262 = vmatpush2.msra.mxu0 0.0
    %263 = vmatprep.subr.mxu0 0.0
    %264 = vmatpush2.msra.mxu0 0.0
    %265 = vmatprep.subr.mxu0 0.0
    %266 = vmatpush2.msra.mxu0 0.0
    %267 = vmatprep.subr.mxu0 0.0
    %268 = vmatpush2.msra.mxu0 0.0
    %269 = vmatprep.subr.mxu0 0.0
    %270 = vmatpush2.msra.mxu0 0.0
    %271 = vmatprep.subr.mxu0 0.0
    %272 = vmatpush2.msra.mxu0 0.0
    %273 = vmatprep.subr.mxu0 0.0
    %274 = vmatpush2.msra.mxu0 0.0
    %275 = vmatprep.subr.mxu0 0.0
    %276 = vmatpush2.msra.mxu0 0.0
    %277 = vmatprep.subr.mxu0 0.0
    %278 = vmatpush2.msra.mxu0 0.0
    %279 = vmatprep.subr.mxu0 0.0
    %280 = vmatpush2.msra.mxu0 0.0
    %281 = vmatprep.mubr.f32.mxu0 0.0
    %282 = vmatmul.mubr.f32.gmra.mxu0 %v209
    %v283 = vpop.f32.mrf.mxu0
    %v284 = vadd.f32 %v196, %v283
    %v285 = vpop.f32.mrf.mxu0
    %286 = vmatprep.mubr.f32.mxu0 0.0
    %287 = vmatmul.mubr.f32.gmra.mxu0 %v212
    %v288 = vpop.f32.mrf.mxu0
    %v289 = vadd.f32 %v201, %v288
    %v290 = vpop.f32.mrf.mxu0
    %291 = vmatprep.mubr.f32.mxu0 0.0
    %292 = vmatmul.mubr.f32.gmra.mxu0 %v215
    %v293 = vpop.f32.mrf.mxu0
    %v294 = vadd.f32 %v206, %v293
    %v295 = vpop.f32.mrf.mxu0
    %296 = vdwg.mxu0
    %v297 = vtanh.pop %v284
    %v298 = vtanh.pop %v289
    %v299 = vtanh.pop %v294
    %s300 = scalar_lea.vmem %s2, 48
    %v301 = vld [vmem:[%s300] sm:$0xff]
    %v302 = vld [vmem:[%s300 + $0x8] sm:$0xff]
    %v303 = vld [vmem:[%s300 + $0x10] sm:$0xff]
    %s304 = scalar_lea.vmem %s3, 72
    %v305 = vld [vmem:[%s304] sm:$0xff]
    %v306 = vld [vmem:[%s304 + $0x8] sm:$0xff]
    %v307 = vld [vmem:[%s304 + $0x10] sm:$0xff]
    %309 = vset.pattern.permute.xlu0 0
    %310 = vperm.xlu0 %309, %v305
    %v311 = vpop.permute.xlu0 %310
    %314 = vset.pattern.permute.xlu0 0
    %315 = vperm.xlu0 %314, %v306
    %v316 = vpop.permute.xlu0 %315
    %319 = vset.pattern.permute.xlu0 0
    %320 = vperm.xlu0 %319, %v307
    %v321 = vpop.permute.xlu0 %320
    %v324 = vsel %vm92, %v301, 0
    %v327 = vsel %vm92, %v302, 0
    %v330 = vsel %vm92, %v303, 0
    %332 = vmatprep.subr.mxu0 0.0
    %333 = vmatpush1.msra.mxu0 0.0
    %334 = vmatprep.subr.mxu0 0.0
    %335 = vmatpush1.msra.mxu0 0.0
    %336 = vmatprep.subr.mxu0 0.0
    %337 = vmatpush1.msra.mxu0 0.0
    %338 = vmatprep.subr.mxu0 0.0
    %339 = vmatpush1.msra.mxu0 0.0
    %340 = vmatprep.subr.mxu0 0.0
    %341 = vmatpush1.msra.mxu0 0.0
    %342 = vmatprep.subr.mxu0 0.0
    %343 = vmatpush1.msra.mxu0 0.0
    %344 = vmatprep.subr.mxu0 0.0
    %345 = vmatpush1.msra.mxu0 0.0
    %346 = vmatprep.subr.mxu0 0.0
    %347 = vmatpush1.msra.mxu0 0.0
    %348 = vmatprep.subr.mxu0 0.0
    %349 = vmatpush1.msra.mxu0 0.0
    %350 = vmatprep.subr.mxu0 0.0
    %351 = vmatpush1.msra.mxu0 0.0
    %352 = vmatprep.subr.mxu0 0.0
    %353 = vmatpush1.msra.mxu0 0.0
    %354 = vmatprep.subr.mxu0 0.0
    %355 = vmatpush1.msra.mxu0 0.0
    %356 = vmatprep.subr.mxu0 0.0
    %357 = vmatpush1.msra.mxu0 0.0
    %358 = vmatprep.subr.mxu0 0.0
    %359 = vmatpush1.msra.mxu0 %v299
    %360 = vmatprep.subr.mxu0 0.0
    %361 = vmatpush1.msra.mxu0 %v298
    %362 = vmatprep.subr.mxu0 0.0
    %363 = vmatpush1.msra.mxu0 %v297
    %364 = vmatprep.subr.mxu0 0.0
    %365 = vmatpush2.msra.mxu0 0.0
    %366 = vmatprep.subr.mxu0 0.0
    %367 = vmatpush2.msra.mxu0 0.0
    %368 = vmatprep.subr.mxu0 0.0
    %369 = vmatpush2.msra.mxu0 0.0
    %370 = vmatprep.subr.mxu0 0.0
    %371 = vmatpush2.msra.mxu0 0.0
    %372 = vmatprep.subr.mxu0 0.0
    %373 = vmatpush2.msra.mxu0 0.0
    %374 = vmatprep.subr.mxu0 0.0
    %375 = vmatpush2.msra.mxu0 0.0
    %376 = vmatprep.subr.mxu0 0.0
    %377 = vmatpush2.msra.mxu0 0.0
    %378 = vmatprep.subr.mxu0 0.0
    %379 = vmatpush2.msra.mxu0 0.0
    %380 = vmatprep.subr.mxu0 0.0
    %381 = vmatpush2.msra.mxu0 0.0
    %382 = vmatprep.subr.mxu0 0.0
    %383 = vmatpush2.msra.mxu0 0.0
    %384 = vmatprep.subr.mxu0 0.0
    %385 = vmatpush2.msra.mxu0 0.0
    %386 = vmatprep.subr.mxu0 0.0
    %387 = vmatpush2.msra.mxu0 0.0
    %388 = vmatprep.subr.mxu0 0.0
    %389 = vmatpush2.msra.mxu0 0.0
    %390 = vmatprep.subr.mxu0 0.0
    %391 = vmatpush2.msra.mxu0 0.0
    %392 = vmatprep.subr.mxu0 0.0
    %393 = vmatpush2.msra.mxu0 0.0
    %394 = vmatprep.subr.mxu0 0.0
    %395 = vmatpush2.msra.mxu0 0.0
    %396 = vmatprep.mubr.f32.mxu0 0.0
    %397 = vmatmul.mubr.f32.gmra.mxu0 %v324
    %v398 = vpop.f32.mrf.mxu0
    %v399 = vadd.f32 %v311, %v398
    %v400 = vpop.f32.mrf.mxu0
    %401 = vmatprep.mubr.f32.mxu0 0.0
    %402 = vmatmul.mubr.f32.gmra.mxu0 %v327
    %v403 = vpop.f32.mrf.mxu0
    %v404 = vadd.f32 %v316, %v403
    %v405 = vpop.f32.mrf.mxu0
    %406 = vmatprep.mubr.f32.mxu0 0.0
    %407 = vmatmul.mubr.f32.gmra.mxu0 %v330
    %v408 = vpop.f32.mrf.mxu0
    %v409 = vadd.f32 %v321, %v408
    %v410 = vpop.f32.mrf.mxu0
    %411 = vdwg.mxu0
    %v412 = vtanh.pop %v399
    %v413 = vtanh.pop %v404
    %v414 = vtanh.pop %v409
    %s415 = scalar_lea.vmem %s2, 72
    %v416 = vld [vmem:[%s415] sm:$0xff]
    %s417 = scalar_lea.vmem %s3, 96
    %v418 = vld [vmem:[%s417] sm:$0xff]
    %420 = vset.pattern.permute.xlu0 0
    %421 = vperm.xlu0 %420, %v418
    %v422 = vpop.permute.xlu0 %421
    %v425 = vsel %vm92, %v416, 0
    %427 = vmatprep.subr.mxu0 0.0
    %428 = vmatpush1.msra.mxu0 0.0
    %429 = vmatprep.subr.mxu0 0.0
    %430 = vmatpush1.msra.mxu0 0.0
    %431 = vmatprep.subr.mxu0 0.0
    %432 = vmatpush1.msra.mxu0 0.0
    %433 = vmatprep.subr.mxu0 0.0
    %434 = vmatpush1.msra.mxu0 0.0
    %435 = vmatprep.subr.mxu0 0.0
    %436 = vmatpush1.msra.mxu0 0.0
    %437 = vmatprep.subr.mxu0 0.0
    %438 = vmatpush1.msra.mxu0 0.0
    %439 = vmatprep.subr.mxu0 0.0
    %440 = vmatpush1.msra.mxu0 0.0
    %441 = vmatprep.subr.mxu0 0.0
    %442 = vmatpush1.msra.mxu0 0.0
    %443 = vmatprep.subr.mxu0 0.0
    %444 = vmatpush1.msra.mxu0 0.0
    %445 = vmatprep.subr.mxu0 0.0
    %446 = vmatpush1.msra.mxu0 0.0
    %447 = vmatprep.subr.mxu0 0.0
    %448 = vmatpush1.msra.mxu0 0.0
    %449 = vmatprep.subr.mxu0 0.0
    %450 = vmatpush1.msra.mxu0 0.0
    %451 = vmatprep.subr.mxu0 0.0
    %452 = vmatpush1.msra.mxu0 0.0
    %453 = vmatprep.subr.mxu0 0.0
    %454 = vmatpush1.msra.mxu0 %v414
    %455 = vmatprep.subr.mxu0 0.0
    %456 = vmatpush1.msra.mxu0 %v413
    %457 = vmatprep.subr.mxu0 0.0
    %458 = vmatpush1.msra.mxu0 %v412
    %459 = vmatprep.subr.mxu0 0.0
    %460 = vmatpush2.msra.mxu0 0.0
    %461 = vmatprep.subr.mxu0 0.0
    %462 = vmatpush2.msra.mxu0 0.0
    %463 = vmatprep.subr.mxu0 0.0
    %464 = vmatpush2.msra.mxu0 0.0
    %465 = vmatprep.subr.mxu0 0.0
    %466 = vmatpush2.msra.mxu0 0.0
    %467 = vmatprep.subr.mxu0 0.0
    %468 = vmatpush2.msra.mxu0 0.0
    %469 = vmatprep.subr.mxu0 0.0
    %470 = vmatpush2.msra.mxu0 0.0
    %471 = vmatprep.subr.mxu0 0.0
    %472 = vmatpush2.msra.mxu0 0.0
    %473 = vmatprep.subr.mxu0 0.0
    %474 = vmatpush2.msra.mxu0 0.0
    %475 = vmatprep.subr.mxu0 0.0
    %476 = vmatpush2.msra.mxu0 0.0
    %477 = vmatprep.subr.mxu0 0.0
    %478 = vmatpush2.msra.mxu0 0.0
    %479 = vmatprep.subr.mxu0 0.0
    %480 = vmatpush2.msra.mxu0 0.0
    %481 = vmatprep.subr.mxu0 0.0
    %482 = vmatpush2.msra.mxu0 0.0
    %483 = vmatprep.subr.mxu0 0.0
    %484 = vmatpush2.msra.mxu0 0.0
    %485 = vmatprep.subr.mxu0 0.0
    %486 = vmatpush2.msra.mxu0 0.0
    %487 = vmatprep.subr.mxu0 0.0
    %488 = vmatpush2.msra.mxu0 0.0
    %489 = vmatprep.subr.mxu0 0.0
    %490 = vmatpush2.msra.mxu0 0.0
    %491 = vmatprep.mubr.f32.mxu0 0.0
    %492 = vmatmul.mubr.f32.gmra.mxu0 %v425
    %v493 = vpop.f32.mrf.mxu0
    %v494 = vadd.f32 %v422, %v493
    %v495 = vpop.f32.mrf.mxu0
    %496 = vdwg.mxu0
    %497 = vst [vmem:[#allocation2] sm:$0xff] %v494
    // Predicated region
    $region18: #{tpu_custom_call.1} parent=1 // pred_check
      _
    $region19: #{tpu_custom_call.1} parent=1 // pred_check_branch
      %499 = sbr.rel (0) target = $region21
    $region20: #{tpu_custom_call.1} parent=1 // pred_region
      %s501 = ssub.s32 128, 128
      %502 = vsyncadd [#allocation3], %s501
      %s504 = sshll.u32 [#allocation2], 4
      %s505 = int_to_ptr.vmem [resolvable:$true] %s504
      %507 = dma.vmem_to_hbm [thread:$0]  %s505, 128, %s4, [#allocation3]
    $region21: #{tpu_custom_call.1} parent=1 // pred_fallthru
      _
    // Predicated region
    $region22: #{tpu_custom_call.1} parent=1 // pred_check
      _
    $region23: #{tpu_custom_call.1} parent=1 // pred_check_branch
      %509 = sbr.rel (0) target = $region25
    $region24: #{tpu_custom_call.1} parent=1 // pred_region
      %510 = dma.done [#allocation3], 128
    $region25: #{tpu_custom_call.1} parent=1 // pred_fallthru
      _
    %511 = vsyncpa [#allocation3], 1

</llo_original>
